<compile_context>
chip_gen: v7x
topology: tpu7x:2x2x1
jax: 0.10.0
libtpu: 0.0.40
codegen_flags: <defaults>
</compile_context>

<pallas_src>
import functools
import math

import jax
import jax.numpy as jnp
from jax import lax
from jax.experimental import pallas as pl
from jax.experimental.pallas import tpu as pltpu


def _self_attention_kernel(x_ref, wq_ref, wk_ref, wv_ref, bq_ref, bv_ref,
                           o_ref, k_scr, v_scr, *, tq):
    """One (batch, query-tile) grid step.

    x_ref  : (1, S, D)  f32   full sequence slab of this batch element
    wq_ref : (D, D)     bf16  query weight, 1/sqrt(D) pre-folded
    wk_ref : (D, D)     bf16  key weight (bias dropped: cancels in softmax)
    wv_ref : (D, D)     bf16  value weight
    bq_ref : (1, D)     f32   query bias, 1/sqrt(D) pre-folded
    bv_ref : (1, D)     f32   value bias
    o_ref  : (1, tq, D) f32   output tile
    k_scr  : (S, D)     bf16  VMEM scratch, persists across query tiles
    v_scr  : (S, D)     bf16  VMEM scratch, persists across query tiles
    """
    qi = pl.program_id(1)

    # K / V projections: computed once per batch element (first query tile),
    # kept resident in VMEM scratch for the remaining query tiles.
    @pl.when(qi == 0)
    def _():
        x_bf = x_ref[0].astype(jnp.bfloat16)                          # (S, D)
        k_scr[...] = jnp.dot(
            x_bf, wk_ref[...],
            preferred_element_type=jnp.float32).astype(jnp.bfloat16)
        v_scr[...] = (jnp.dot(x_bf, wv_ref[...],
                              preferred_element_type=jnp.float32)
                      + bv_ref[...]).astype(jnp.bfloat16)

    # Q projection for this query tile (1/sqrt(D) already folded into wq/bq).
    row0 = pl.multiple_of(qi * tq, tq)
    xq = x_ref[0, pl.ds(row0, tq), :].astype(jnp.bfloat16)            # (tq, D)
    q = jnp.dot(xq, wq_ref[...],
                preferred_element_type=jnp.float32) + bq_ref[...]     # f32

    # scores = q @ k^T  (contract on D, no explicit transpose), f32 accumulate.
    scores = lax.dot_general(q.astype(jnp.bfloat16), k_scr[...],
                             (((1,), (1,)), ((), ())),
                             preferred_element_type=jnp.float32)      # (tq, S)

    # Numerically stable softmax with deferred normalization.
    m = jnp.max(scores, axis=-1, keepdims=True)
    p = jnp.exp(scores - m)                                           # (tq, S)
    l = jnp.sum(p, axis=-1, keepdims=True)                            # (tq, 1)

    out = jnp.dot(p.astype(jnp.bfloat16), v_scr[...],
                  preferred_element_type=jnp.float32)                 # (tq, D)
    out = out * pl.reciprocal(l, approx=True)
    o_ref[0] = out.astype(o_ref.dtype)


def _pick_query_tile(seq_len, target=256):
    """Largest query tile <= target that divides S (multiple of 8), else S."""
    if seq_len <= target:
        return seq_len
    for tq in range(min(target, seq_len), 7, -1):
        if seq_len % tq == 0 and tq % 8 == 0:
            return tq
    return seq_len


def self_attention(x, wq_s, wk_b, wv_b, bq_s, bv_b, *, q_tile=256):
    """x: (B,S,D) f32; wq_s/wk_b/wv_b: (D,D) bf16 (wq pre-scaled by 1/sqrt(D));
    bq_s: (1,D) f32 pre-scaled; bv_b: (1,D) f32.  Returns (B,S,D) f32."""
    B, S, D = x.shape
    assert wq_s.shape == (D, D) and wk_b.shape == (D, D) and wv_b.shape == (D, D)
    assert bq_s.shape == (1, D) and bv_b.shape == (1, D)

    tq = _pick_query_tile(S, q_tile)
    nq = S // tq

    kernel = functools.partial(_self_attention_kernel, tq=tq)
    full = lambda b, qi: (0, 0)

    # VMEM budget (bytes): double-buffered x / out / weights, bf16 K/V scratch,
    # plus generous headroom for the (tq, S) score / exp intermediates.
    est = (2 * S * D * 4 + 2 * tq * D * 4
           + 2 * (3 * D * D * 2 + 2 * D * 4)
           + 2 * S * D * 2
           + tq * S * 12 + tq * D * 16)
    vmem_limit = int(min(64 * 2**20, max(2 * est, 16 * 2**20)))

    cost = pl.CostEstimate(
        flops=int(B * (6 * S * D * D + 4 * S * S * D)),
        transcendentals=int(B * S * S),
        bytes_accessed=int(2 * B * S * D * 4 + 3 * D * D * 2 + 2 * D * 4),
    )

    return pl.pallas_call(
        kernel,
        out_shape=jax.ShapeDtypeStruct((B, S, D), x.dtype),
        grid_spec=pltpu.PrefetchScalarGridSpec(
            num_scalar_prefetch=0,
            grid=(B, nq),
            in_specs=[
                pl.BlockSpec((1, S, D), lambda b, qi: (b, 0, 0)),   # x slab
                pl.BlockSpec((D, D), full),                          # Wq (scaled)
                pl.BlockSpec((D, D), full),                          # Wk
                pl.BlockSpec((D, D), full),                          # Wv
                pl.BlockSpec((1, D), full),                          # bq (scaled)
                pl.BlockSpec((1, D), full),                          # bv
            ],
            out_specs=pl.BlockSpec((1, tq, D), lambda b, qi: (b, qi, 0)),
            scratch_shapes=[
                pltpu.VMEM((S, D), jnp.bfloat16),                    # K
                pltpu.VMEM((S, D), jnp.bfloat16),                    # V
            ],
        ),
        compiler_params=pltpu.CompilerParams(
            dimension_semantics=("parallel", "arbitrary"),
            vmem_limit_bytes=vmem_limit),
        cost_estimate=cost,
    )(x, wq_s, wk_b, wv_b, bq_s, bv_b)


# --------------- deterministic parameter construction (synthetic) ---------------

def make_params(key, d_model):
    kq, kk, kv, kbq, kbk, kbv = jax.random.split(key, 6)
    scale = 1.0 / (d_model ** 0.5)
    # Stored directly in kernel layout (in, out), i.e. PyTorch's W^T.
    wq = jax.random.normal(kq, (d_model, d_model), jnp.float32) * scale
    wk = jax.random.normal(kk, (d_model, d_model), jnp.float32) * scale
    wv = jax.random.normal(kv, (d_model, d_model), jnp.float32) * scale
    bq = jax.random.normal(kbq, (d_model,), jnp.float32) * 0.1
    bk = jax.random.normal(kbk, (d_model,), jnp.float32) * 0.1
    bv = jax.random.normal(kbv, (d_model,), jnp.float32) * 0.1
    inv_sqrt_d = 1.0 / math.sqrt(d_model)
    return dict(
        wq=wq, wk=wk, wv=wv, bq=bq, bk=bk, bv=bv,
        # Kernel-ready packed params: scale folded into Wq/bq, bk dropped
        # (cancels in softmax), weights stored in bf16.
        wq_s=(wq * inv_sqrt_d).astype(jnp.bfloat16),
        wk_b=wk.astype(jnp.bfloat16),
        wv_b=wv.astype(jnp.bfloat16),
        bq_s=(bq * inv_sqrt_d).astype(jnp.float32)[None, :],
        bv_b=bv.astype(jnp.float32)[None, :],
    )


def _reference(x, p):
    """Plain-JAX f32 reference of the original module's forward."""
    hp = jax.lax.Precision.HIGHEST
    q = jnp.einsum('bsd,de->bse', x, p['wq'], precision=hp) + p['bq']
    k = jnp.einsum('bsd,de->bse', x, p['wk'], precision=hp) + p['bk']
    v = jnp.einsum('bsd,de->bse', x, p['wv'], precision=hp) + p['bv']
    scores = jnp.einsum('bqd,bkd->bqk', q, k, precision=hp) / (x.shape[-1] ** 0.5)
    attn = jax.nn.softmax(scores, axis=-1)
    return jnp.einsum('bqk,bkd->bqd', attn, v, precision=hp)


if __name__ == "__main__":
    B, S, D = 2, 64, 32
    key = jax.random.PRNGKey(0)
    kx, kp = jax.random.split(key)
    x = jax.random.normal(kx, (B, S, D), jnp.float32)
    params = make_params(kp, D)

    out = self_attention(x, params["wq_s"], params["wk_b"], params["wv_b"],
                         params["bq_s"], params["bv_b"])
    out = jax.block_until_ready(out)

    ref = _reference(x, params)
    assert out.shape == (B, S, D)
    max_err = float(jnp.max(jnp.abs(out - ref)))
    # bf16 MXU operands with f32 accumulation -> loosened tolerance vs f32 ref.
    assert jnp.allclose(out, ref, atol=5e-2, rtol=5e-2), (
        f"mismatch vs reference (max abs err {max_err})")
    print("KERNEL_OK")
</pallas_src>

<mosaic_0001>
module attributes {stable_mosaic.version = 11 : i64} {
  func.func @_self_attention_kernel(%arg0: i32, %arg1: i32, %arg2: memref<1x64x32xf32, #tpu.memory_space<vmem>>, %arg3: memref<32x32xbf16, #tpu.memory_space<vmem>>, %arg4: memref<32x32xbf16, #tpu.memory_space<vmem>>, %arg5: memref<32x32xbf16, #tpu.memory_space<vmem>>, %arg6: memref<1x32xf32, #tpu.memory_space<vmem>>, %arg7: memref<1x32xf32, #tpu.memory_space<vmem>>, %arg8: memref<1x64x32xf32, #tpu.memory_space<vmem>>, %arg9: memref<64x32xbf16, #tpu.memory_space<vmem>>, %arg10: memref<64x32xbf16, #tpu.memory_space<vmem>>) attributes {dimension_semantics = [#tpu.dimension_semantics<parallel>, #tpu.dimension_semantics<arbitrary>], iteration_bounds = array<i64: 2, 1>, scalar_prefetch = 0 : i64, scratch_operands = 2 : i64, tpu.core_type = #tpu.core_type<tc>, window_params = [{transform_indices = @transform_0, window_bounds = array<i64: 1, 64, 32>}, {pipeline_mode = #tpu.pipeline_mode<synchronous>, transform_indices = @transform_1, window_bounds = array<i64: 32, 32>}, {pipeline_mode = #tpu.pipeline_mode<synchronous>, transform_indices = @transform_2, window_bounds = array<i64: 32, 32>}, {pipeline_mode = #tpu.pipeline_mode<synchronous>, transform_indices = @transform_3, window_bounds = array<i64: 32, 32>}, {pipeline_mode = #tpu.pipeline_mode<synchronous>, transform_indices = @transform_4, window_bounds = array<i64: 1, 32>}, {pipeline_mode = #tpu.pipeline_mode<synchronous>, transform_indices = @transform_5, window_bounds = array<i64: 1, 32>}, {transform_indices = @transform_6, window_bounds = array<i64: 1, 64, 32>}]} {
    %c0_i32 = arith.constant 0 : i32
    %0 = arith.cmpi eq, %arg1, %c0_i32 : i32
    %1 = arith.extui %0 : i1 to i32
    %c0_i32_0 = arith.constant 0 : i32
    %2 = arith.cmpi ne, %1, %c0_i32_0 : i32
    scf.if %2 {
      %c0_17 = arith.constant 0 : index
      %c0_18 = arith.constant 0 : index
      %c0_19 = arith.constant 0 : index
      %33 = vector.load %arg2[%c0_17, %c0_18, %c0_19] : memref<1x64x32xf32, #tpu.memory_space<vmem>>, vector<1x64x32xf32>
      %34 = vector.shape_cast %33 : vector<1x64x32xf32> to vector<64x32xf32>
      %35 = arith.truncf %34 : vector<64x32xf32> to vector<64x32xbf16>
      %c0_20 = arith.constant 0 : index
      %c0_21 = arith.constant 0 : index
      %36 = vector.load %arg4[%c0_20, %c0_21] : memref<32x32xbf16, #tpu.memory_space<vmem>>, vector<32x32xbf16>
      %cst_22 = arith.constant dense<0.000000e+00> : vector<64x32xf32>
      %37 = tpu.matmul %35, %36, %cst_22 {dimension_numbers = #tpu.dot_dimension_numbers<[1], [0], [0], [1], [0, 0, 1, 1], [], []>} : vector<64x32xbf16>, vector<32x32xbf16>, vector<64x32xf32> -> vector<64x32xf32>
      %38 = arith.truncf %37 : vector<64x32xf32> to vector<64x32xbf16>
      %c0_23 = arith.constant 0 : index
      %c0_24 = arith.constant 0 : index
      %39 = vector.load %arg9[%c0_23, %c0_24] : memref<64x32xbf16, #tpu.memory_space<vmem>>, vector<64x32xbf16>
      tpu.vector_store %arg9[%c0_23, %c0_24], %38 {strides = array<i32>} : memref<64x32xbf16, #tpu.memory_space<vmem>>, vector<64x32xbf16>,
      %c0_25 = arith.constant 0 : index
      %c0_26 = arith.constant 0 : index
      %40 = vector.load %arg5[%c0_25, %c0_26] : memref<32x32xbf16, #tpu.memory_space<vmem>>, vector<32x32xbf16>
      %cst_27 = arith.constant dense<0.000000e+00> : vector<64x32xf32>
      %41 = tpu.matmul %35, %40, %cst_27 {dimension_numbers = #tpu.dot_dimension_numbers<[1], [0], [0], [1], [0, 0, 1, 1], [], []>} : vector<64x32xbf16>, vector<32x32xbf16>, vector<64x32xf32> -> vector<64x32xf32>
      %c0_28 = arith.constant 0 : index
      %c0_29 = arith.constant 0 : index
      %42 = vector.load %arg7[%c0_28, %c0_29] : memref<1x32xf32, #tpu.memory_space<vmem>>, vector<1x32xf32>
      %43 = vector.broadcast %42 : vector<1x32xf32> to vector<64x32xf32>
      %44 = arith.addf %41, %43 : vector<64x32xf32>
      %45 = arith.truncf %44 : vector<64x32xf32> to vector<64x32xbf16>
      %c0_30 = arith.constant 0 : index
      %c0_31 = arith.constant 0 : index
      %46 = vector.load %arg10[%c0_30, %c0_31] : memref<64x32xbf16, #tpu.memory_space<vmem>>, vector<64x32xbf16>
      tpu.vector_store %arg10[%c0_30, %c0_31], %45 {strides = array<i32>} : memref<64x32xbf16, #tpu.memory_space<vmem>>, vector<64x32xbf16>,
    } else {
    }
    %c64_i32 = arith.constant 64 : i32
    %3 = arith.muli %arg1, %c64_i32 : i32
    %4 = tpu.assume_multiple %3, 64 : i32
    %c0 = arith.constant 0 : index
    %5 = arith.index_cast %4 : i32 to index
    %c0_1 = arith.constant 0 : index
    %6 = vector.load %arg2[%c0, %5, %c0_1] : memref<1x64x32xf32, #tpu.memory_space<vmem>>, vector<1x64x32xf32>
    %7 = vector.shape_cast %6 : vector<1x64x32xf32> to vector<64x32xf32>
    %8 = arith.truncf %7 : vector<64x32xf32> to vector<64x32xbf16>
    %c0_2 = arith.constant 0 : index
    %c0_3 = arith.constant 0 : index
    %9 = vector.load %arg3[%c0_2, %c0_3] : memref<32x32xbf16, #tpu.memory_space<vmem>>, vector<32x32xbf16>
    %cst = arith.constant dense<0.000000e+00> : vector<64x32xf32>
    %10 = tpu.matmul %8, %9, %cst {dimension_numbers = #tpu.dot_dimension_numbers<[1], [0], [0], [1], [0, 0, 1, 1], [], []>} : vector<64x32xbf16>, vector<32x32xbf16>, vector<64x32xf32> -> vector<64x32xf32>
    %c0_4 = arith.constant 0 : index
    %c0_5 = arith.constant 0 : index
    %11 = vector.load %arg6[%c0_4, %c0_5] : memref<1x32xf32, #tpu.memory_space<vmem>>, vector<1x32xf32>
    %12 = vector.broadcast %11 : vector<1x32xf32> to vector<64x32xf32>
    %13 = arith.addf %10, %12 : vector<64x32xf32>
    %14 = arith.truncf %13 : vector<64x32xf32> to vector<64x32xbf16>
    %c0_6 = arith.constant 0 : index
    %c0_7 = arith.constant 0 : index
    %15 = vector.load %arg9[%c0_6, %c0_7] : memref<64x32xbf16, #tpu.memory_space<vmem>>, vector<64x32xbf16>
    %cst_8 = arith.constant dense<0.000000e+00> : vector<64x64xf32>
    %16 = tpu.matmul %14, %15, %cst_8 {dimension_numbers = #tpu.dot_dimension_numbers<[1], [1], [0], [0], [0, 0, 1, 0], [], []>} : vector<64x32xbf16>, vector<64x32xbf16>, vector<64x64xf32> -> vector<64x64xf32>
    %cst_9 = arith.constant dense<0xFF800000> : vector<64xf32>
    %17 = vector.multi_reduction <maximumf>, %16, %cst_9 [1] : vector<64x64xf32> to vector<64xf32>
    %18 = vector.shape_cast %17 : vector<64xf32> to vector<64x1xf32>
    %19 = vector.broadcast %18 : vector<64x1xf32> to vector<64x64xf32>
    %20 = arith.subf %16, %19 : vector<64x64xf32>
    %21 = math.exp %20 : vector<64x64xf32>
    %cst_10 = arith.constant dense<0.000000e+00> : vector<64xf32>
    %22 = vector.multi_reduction <add>, %21, %cst_10 [1] : vector<64x64xf32> to vector<64xf32>
    %23 = vector.shape_cast %22 : vector<64xf32> to vector<64x1xf32>
    %24 = arith.truncf %21 : vector<64x64xf32> to vector<64x64xbf16>
    %c0_11 = arith.constant 0 : index
    %c0_12 = arith.constant 0 : index
    %25 = vector.load %arg10[%c0_11, %c0_12] : memref<64x32xbf16, #tpu.memory_space<vmem>>, vector<64x32xbf16>
    %cst_13 = arith.constant dense<0.000000e+00> : vector<64x32xf32>
    %26 = tpu.matmul %24, %25, %cst_13 {dimension_numbers = #tpu.dot_dimension_numbers<[1], [0], [0], [1], [0, 0, 1, 1], [], []>} : vector<64x64xbf16>, vector<64x32xbf16>, vector<64x32xf32> -> vector<64x32xf32>
    %27 = tpu.reciprocal %23 {approx = true} : vector<64x1xf32> -> vector<64x1xf32>
    %28 = vector.broadcast %27 : vector<64x1xf32> to vector<64x32xf32>
    %29 = arith.mulf %26, %28 : vector<64x32xf32>
    %c0_14 = arith.constant 0 : index
    %c0_15 = arith.constant 0 : index
    %c0_16 = arith.constant 0 : index
    %30 = vector.load %arg8[%c0_14, %c0_15, %c0_16] : memref<1x64x32xf32, #tpu.memory_space<vmem>>, vector<1x64x32xf32>
    %31 = vector.shape_cast %30 : vector<1x64x32xf32> to vector<64x32xf32>
    %32 = vector.shape_cast %29 : vector<64x32xf32> to vector<1x64x32xf32>
    tpu.vector_store %arg8[%c0_14, %c0_15, %c0_16], %32 {strides = array<i32>} : memref<1x64x32xf32, #tpu.memory_space<vmem>>, vector<1x64x32xf32>,
    return
  }
  func.func @transform_0(%arg0: i32, %arg1: i32) -> (i32, i32, i32) {
    %c0_i32 = arith.constant 0 : i32
    %c0_i32_0 = arith.constant 0 : i32
    %c0_i32_1 = arith.constant 0 : i32
    return %arg0, %c0_i32, %c0_i32_0 : i32, i32, i32
  }
  func.func @transform_1(%arg0: i32, %arg1: i32) -> (i32, i32) {
    %c0_i32 = arith.constant 0 : i32
    %c0_i32_0 = arith.constant 0 : i32
    %c0_i32_1 = arith.constant 0 : i32
    return %c0_i32, %c0_i32_0 : i32, i32
  }
  func.func @transform_2(%arg0: i32, %arg1: i32) -> (i32, i32) {
    %c0_i32 = arith.constant 0 : i32
    %c0_i32_0 = arith.constant 0 : i32
    %c0_i32_1 = arith.constant 0 : i32
    return %c0_i32, %c0_i32_0 : i32, i32
  }
  func.func @transform_3(%arg0: i32, %arg1: i32) -> (i32, i32) {
    %c0_i32 = arith.constant 0 : i32
    %c0_i32_0 = arith.constant 0 : i32
    %c0_i32_1 = arith.constant 0 : i32
    return %c0_i32, %c0_i32_0 : i32, i32
  }
  func.func @transform_4(%arg0: i32, %arg1: i32) -> (i32, i32) {
    %c0_i32 = arith.constant 0 : i32
    %c0_i32_0 = arith.constant 0 : i32
    %c0_i32_1 = arith.constant 0 : i32
    return %c0_i32, %c0_i32_0 : i32, i32
  }
  func.func @transform_5(%arg0: i32, %arg1: i32) -> (i32, i32) {
    %c0_i32 = arith.constant 0 : i32
    %c0_i32_0 = arith.constant 0 : i32
    %c0_i32_1 = arith.constant 0 : i32
    return %c0_i32, %c0_i32_0 : i32, i32
  }
  func.func @transform_6(%arg0: i32, %arg1: i32) -> (i32, i32, i32) {
    %c0_i32 = arith.constant 0 : i32
    %c0_i32_0 = arith.constant 0 : i32
    return %arg0, %arg1, %c0_i32 : i32, i32, i32
  }
}

</mosaic_0001>

<llo_original>
// kernel: tpu_custom_call.1
$region0: #{tpu_custom_call.1}
  #allocation0 [shape = 'u32[]', space=smem, size = 0x4, offset = 0x4, fixed_abs, tag = 'smem constant byte address 0x4 - core index']
  #allocation1 [shape = 'u32[144,128]{1,0:T(1,128)}', space=vmem, size = 0x12000, scoped, tag = 'internal scratch']
  #allocation2 [shape = 'bf16[64,32]{1,0:T(16,128)(2,1)}', space=vmem, size = 0x4000, scoped, tag = 'scratch operand']
  #allocation3 [shape = 'bf16[64,32]{1,0:T(16,128)(2,1)}', space=vmem, size = 0x4000, scoped, tag = 'scratch operand']
  %s0 = inlined_call_operand.vmem [shape: f32[2,64,32], index: 0, kind: input, shape index: {}]
  %s1 = inlined_call_operand.vmem [shape: bf16[32,32], index: 1, kind: input, shape index: {}]
  %s2 = inlined_call_operand.vmem [shape: bf16[32,32], index: 2, kind: input, shape index: {}]
  %s3 = inlined_call_operand.vmem [shape: bf16[32,32], index: 3, kind: input, shape index: {}]
  %s4 = inlined_call_operand.vmem [shape: f32[1,32], index: 4, kind: input, shape index: {}]
  %s5 = inlined_call_operand.vmem [shape: f32[1,32], index: 5, kind: input, shape index: {}]
  %s6 = inlined_call_operand.vmem [shape: f32[2,64,32], index: 6, kind: output, shape index: {}]
  %s7 = sld [smem:[#allocation0]]
  $region61: #{tpu_custom_call.1} parent=0
    _
  %s9 = ssub.s32 1, %s7
  %s10 = scalar_select 0, %s9, %s7
  loop: start=0, step=1, limit=4
  $region2: #{tpu_custom_call.1} parent=0 // loop_pre_header
    _
  $region3: #{tpu_custom_call.1} parent=0 // loop_header
    %s12 = sphi 0, %s16
    %p13 = scmp.ge.s32.totalorder %s12, 4
    %s19 = sphi 0, %s31
    %s20 = sphi 0, %s27
    %s21 = sphi 0, %s19
    %s22 = sphi 0, %s20
    %s23 = sphi 0, %s21
    %s24 = sphi 0, %s22
    %s34 = sphi 0, %s36
    %s37 = sphi 0, %s34
    %s38 = sphi 0, %s37
    %s54 = sphi 0, %s38
    %s58 = sphi 0, %s58
    %s60 = sphi 0, %s58
    %s61 = sphi 0, %s60
    %s75 = sphi 0, %s61
    %s79 = sphi 0, %s79
    %s81 = sphi 0, %s79
    %s82 = sphi 0, %s81
    %s96 = sphi 0, %s82
    %s100 = sphi 0, %s100
    %s102 = sphi 0, %s100
    %s103 = sphi 0, %s102
    %s117 = sphi 0, %s103
    %s121 = sphi 0, %s121
    %s123 = sphi 0, %s121
    %s124 = sphi 0, %s123
    %s138 = sphi 0, %s124
    %s142 = sphi 0, %s142
    %s144 = sphi 0, %s142
    %s145 = sphi 0, %s144
    %s159 = sphi 0, %s145
    %s167 = sphi 0, %s169
    %s170 = sphi 0, %s167
    %s171 = sphi 0, %s170
    %s187 = sphi 0, %s171
  $region4: #{tpu_custom_call.1} parent=0 // loop_header_branch
    %15 = sbr.rel (%p13) target = $region8
  $region5: #{tpu_custom_call.1} parent=0 // loop_body
    %s17 = ssub.s32 %s12, 1
    %s18 = ssub.s32 %s12, 2
    %s25 = sadd.s32 1, %s20
    %p26 = scmp.ge.s32.totalorder %s25, 1
    %s27 = scalar_select %p26, 0, %s25
    %s28 = sadd.s32 1, %s19
    %s29 = scalar_select %p26, %s28, %s19
    %p30 = scmp.ge.s32.totalorder %s29, 2
    %s31 = scalar_select %p30, 0, %s29
    %s32 = ssub.s32 %s19, %s31
    %p33 = scmp.eq.s32.totalorder %s32, 0
    %s35 = sadd.s32 %s34, 1
    %s36 = scalar_select %p33, %s34, %s35
    %p39 = pneg %p33
    %p40 = scmp.eq.s32.totalorder %s12, 1
    %p41 = por %p39, %p40
    %p42 = scmp.ne.s32.totalorder %s34, %s37
    %p43 = scmp.eq.s32.totalorder %s12, 0
    %p44 = por %p42, %p43
    %p45 = scmp.ne.s32.totalorder %s34, %s37
    %p46 = scmp.eq.s32.totalorder %s17, 1
    %p47 = por %p45, %p46
    %p48 = scmp.ne.s32.totalorder %s37, %s38
    %p49 = scmp.eq.s32.totalorder %s17, 0
    %p50 = por %p48, %p49
    %p51 = scmp.ne.s32.totalorder %s37, %s38
    %p52 = scmp.eq.s32.totalorder %s18, 1
    %p53 = por %p51, %p52
    %p55 = scmp.ne.s32.totalorder %s38, %s54
    %p56 = scmp.eq.s32.totalorder %s18, 0
    %p57 = por %p55, %p56
    %s59 = sadd.s32 %s58, 1
    %p62 = scmp.eq.s32.totalorder %s12, 1
    %p63 = scmp.ne.s32.totalorder %s58, %s60
    %p64 = scmp.eq.s32.totalorder %s12, 0
    %p65 = por %p63, %p64
    %p66 = scmp.ne.s32.totalorder %s58, %s60
    %p67 = scmp.eq.s32.totalorder %s17, 1
    %p68 = por %p66, %p67
    %p69 = scmp.ne.s32.totalorder %s60, %s61
    %p70 = scmp.eq.s32.totalorder %s17, 0
    %p71 = por %p69, %p70
    %p72 = scmp.ne.s32.totalorder %s60, %s61
    %p73 = scmp.eq.s32.totalorder %s18, 1
    %p74 = por %p72, %p73
    %p76 = scmp.ne.s32.totalorder %s61, %s75
    %p77 = scmp.eq.s32.totalorder %s18, 0
    %p78 = por %p76, %p77
    %s80 = sadd.s32 %s79, 1
    %p83 = scmp.eq.s32.totalorder %s12, 1
    %p84 = scmp.ne.s32.totalorder %s79, %s81
    %p85 = scmp.eq.s32.totalorder %s12, 0
    %p86 = por %p84, %p85
    %p87 = scmp.ne.s32.totalorder %s79, %s81
    %p88 = scmp.eq.s32.totalorder %s17, 1
    %p89 = por %p87, %p88
    %p90 = scmp.ne.s32.totalorder %s81, %s82
    %p91 = scmp.eq.s32.totalorder %s17, 0
    %p92 = por %p90, %p91
    %p93 = scmp.ne.s32.totalorder %s81, %s82
    %p94 = scmp.eq.s32.totalorder %s18, 1
    %p95 = por %p93, %p94
    %p97 = scmp.ne.s32.totalorder %s82, %s96
    %p98 = scmp.eq.s32.totalorder %s18, 0
    %p99 = por %p97, %p98
    %s101 = sadd.s32 %s100, 1
    %p104 = scmp.eq.s32.totalorder %s12, 1
    %p105 = scmp.ne.s32.totalorder %s100, %s102
    %p106 = scmp.eq.s32.totalorder %s12, 0
    %p107 = por %p105, %p106
    %p108 = scmp.ne.s32.totalorder %s100, %s102
    %p109 = scmp.eq.s32.totalorder %s17, 1
    %p110 = por %p108, %p109
    %p111 = scmp.ne.s32.totalorder %s102, %s103
    %p112 = scmp.eq.s32.totalorder %s17, 0
    %p113 = por %p111, %p112
    %p114 = scmp.ne.s32.totalorder %s102, %s103
    %p115 = scmp.eq.s32.totalorder %s18, 1
    %p116 = por %p114, %p115
    %p118 = scmp.ne.s32.totalorder %s103, %s117
    %p119 = scmp.eq.s32.totalorder %s18, 0
    %p120 = por %p118, %p119
    %s122 = sadd.s32 %s121, 1
    %p125 = scmp.eq.s32.totalorder %s12, 1
    %p126 = scmp.ne.s32.totalorder %s121, %s123
    %p127 = scmp.eq.s32.totalorder %s12, 0
    %p128 = por %p126, %p127
    %p129 = scmp.ne.s32.totalorder %s121, %s123
    %p130 = scmp.eq.s32.totalorder %s17, 1
    %p131 = por %p129, %p130
    %p132 = scmp.ne.s32.totalorder %s123, %s124
    %p133 = scmp.eq.s32.totalorder %s17, 0
    %p134 = por %p132, %p133
    %p135 = scmp.ne.s32.totalorder %s123, %s124
    %p136 = scmp.eq.s32.totalorder %s18, 1
    %p137 = por %p135, %p136
    %p139 = scmp.ne.s32.totalorder %s124, %s138
    %p140 = scmp.eq.s32.totalorder %s18, 0
    %p141 = por %p139, %p140
    %s143 = sadd.s32 %s142, 1
    %p146 = scmp.eq.s32.totalorder %s12, 1
    %p147 = scmp.ne.s32.totalorder %s142, %s144
    %p148 = scmp.eq.s32.totalorder %s12, 0
    %p149 = por %p147, %p148
    %p150 = scmp.ne.s32.totalorder %s142, %s144
    %p151 = scmp.eq.s32.totalorder %s17, 1
    %p152 = por %p150, %p151
    %p153 = scmp.ne.s32.totalorder %s144, %s145
    %p154 = scmp.eq.s32.totalorder %s17, 0
    %p155 = por %p153, %p154
    %p156 = scmp.ne.s32.totalorder %s144, %s145
    %p157 = scmp.eq.s32.totalorder %s18, 1
    %p158 = por %p156, %p157
    %p160 = scmp.ne.s32.totalorder %s145, %s159
    %p161 = scmp.eq.s32.totalorder %s18, 0
    %p162 = por %p160, %p161
    %s163 = ssub.s32 %s19, %s31
    %s164 = ssub.s32 %s20, %s27
    %s165 = sor.u32 %s163, %s164
    %p166 = scmp.eq.s32.totalorder %s165, 0
    %s168 = sadd.s32 %s167, 1
    %s169 = scalar_select %p166, %s167, %s168
    %p172 = pneg %p166
    %p173 = scmp.eq.s32.totalorder %s12, 1
    %p174 = por %p172, %p173
    %p175 = scmp.ne.s32.totalorder %s167, %s170
    %p176 = scmp.eq.s32.totalorder %s12, 0
    %p177 = por %p175, %p176
    %p178 = scmp.ne.s32.totalorder %s167, %s170
    %p179 = scmp.eq.s32.totalorder %s17, 1
    %p180 = por %p178, %p179
    %p181 = scmp.ne.s32.totalorder %s170, %s171
    %p182 = scmp.eq.s32.totalorder %s17, 0
    %p183 = por %p181, %p182
    %p184 = scmp.ne.s32.totalorder %s170, %s171
    %p185 = scmp.eq.s32.totalorder %s18, 1
    %p186 = por %p184, %p185
    %p188 = scmp.ne.s32.totalorder %s171, %s187
    %p189 = scmp.eq.s32.totalorder %s18, 0
    %p190 = por %p188, %p189
    %p191 = scmp.le.s32.totalorder 1, %s12
    %p192 = scmp.lt.s32.totalorder %s12, 3
    %p193 = pnand %p191, %p192
    %p194 = pneg %p193
    // Predicated region
    $region9: #{tpu_custom_call.1} parent=5 // pred_check
      _
    $region10: #{tpu_custom_call.1} parent=5 // pred_check_branch
      %196 = sbr.rel (%p193) target = $region12
    $region11: #{tpu_custom_call.1} parent=5 // pred_region
      %s197 = ssub.s32 %s12, 1
      // Predicated region
      $region13: #{tpu_custom_call.1} parent=11 // pred_check
        %p198 = pneg %p71
      $region14: #{tpu_custom_call.1} parent=11 // pred_check_branch
        %200 = sbr.rel (%p198) target = $region16
      $region15: #{tpu_custom_call.1} parent=11 // pred_region
        _
      $region16: #{tpu_custom_call.1} parent=11 // pred_fallthru
        _
      // Predicated region
      $region17: #{tpu_custom_call.1} parent=11 // pred_check
        %p201 = pneg %p92
      $region18: #{tpu_custom_call.1} parent=11 // pred_check_branch
        %203 = sbr.rel (%p201) target = $region20
      $region19: #{tpu_custom_call.1} parent=11 // pred_region
        _
      $region20: #{tpu_custom_call.1} parent=11 // pred_fallthru
        _
      // Predicated region
      $region21: #{tpu_custom_call.1} parent=11 // pred_check
        %p204 = pneg %p113
      $region22: #{tpu_custom_call.1} parent=11 // pred_check_branch
        %206 = sbr.rel (%p204) target = $region24
      $region23: #{tpu_custom_call.1} parent=11 // pred_region
        _
      $region24: #{tpu_custom_call.1} parent=11 // pred_fallthru
        _
      // Predicated region
      $region25: #{tpu_custom_call.1} parent=11 // pred_check
        %p207 = pneg %p134
      $region26: #{tpu_custom_call.1} parent=11 // pred_check_branch
        %209 = sbr.rel (%p207) target = $region28
      $region27: #{tpu_custom_call.1} parent=11 // pred_region
        _
      $region28: #{tpu_custom_call.1} parent=11 // pred_fallthru
        _
      // Predicated region
      $region29: #{tpu_custom_call.1} parent=11 // pred_check
        %p210 = pneg %p155
      $region30: #{tpu_custom_call.1} parent=11 // pred_check_branch
        %212 = sbr.rel (%p210) target = $region32
      $region31: #{tpu_custom_call.1} parent=11 // pred_region
        _
      $region32: #{tpu_custom_call.1} parent=11 // pred_fallthru
        _
    $region12: #{tpu_custom_call.1} parent=5 // pred_fallthru
      _
    %p213 = scmp.lt.s32.totalorder %s12, 2
    // Predicated region
    $region33: #{tpu_custom_call.1} parent=5 // pred_check
      %p214 = pneg %p213
    $region34: #{tpu_custom_call.1} parent=5 // pred_check_branch
      %216 = sbr.rel (%p214) target = $region36
    $region35: #{tpu_custom_call.1} parent=5 // pred_region
      // Predicated region
      $region37: #{tpu_custom_call.1} parent=35 // pred_check
        %p217 = pneg %p44
      $region38: #{tpu_custom_call.1} parent=35 // pred_check_branch
        %219 = sbr.rel (%p217) target = $region40
      $region39: #{tpu_custom_call.1} parent=35 // pred_region
        %p220 = scmp.lt.s32.totalorder %s19, 1
        %s221 = scalar_select %p220, %s19, 1
        %s222 = smul.addr %s221, 8
        %s223 = smul.addr %s222, 8
        %s224 = scalar_lea.vmem %s0, %s223
      $region40: #{tpu_custom_call.1} parent=35 // pred_fallthru
        _
    $region36: #{tpu_custom_call.1} parent=5 // pred_fallthru
      _
    %p225 = scmp.le.s32.totalorder 1, %s12
    %p226 = scmp.lt.s32.totalorder %s12, 3
    %p227 = pnand %p225, %p226
    %p228 = pneg %p227
    // Predicated region
    $region41: #{tpu_custom_call.1} parent=5 // pred_check
      _
    $region42: #{tpu_custom_call.1} parent=5 // pred_check_branch
      %230 = sbr.rel (%p227) target = $region44
    $region43: #{tpu_custom_call.1} parent=5 // pred_region
      %s231 = ssub.s32 %s12, 1
      %p232 = scmp.lt.s32.totalorder %s21, 1
      %s233 = scalar_select %p232, %s21, 1
      %s234 = smul.addr %s233, 8
      %s235 = smul.addr %s234, 8
      %s236 = scalar_lea.vmem %s0, %s235
      %p237 = pneg %p50
      %p238 = pneg %p47
      %p239 = pneg %p71
      %p240 = pneg %p68
      %p241 = pneg %p92
      %p242 = pneg %p89
      %p243 = pneg %p113
      %p244 = pneg %p110
      %p245 = pneg %p134
      %p246 = pneg %p131
      %p247 = pneg %p155
      %p248 = pneg %p152
      %p249 = pneg %p183
      %p250 = pneg %p180
      %s251 = smul.u32 8, %s22
      %p252 = scmp.lt.s32.totalorder %s21, 1
      %s253 = scalar_select %p252, %s21, 1
      %p254 = scmp.lt.s32.totalorder %s251, 7
      %s255 = scalar_select %p254, %s251, 7
      %s256 = smul.addr %s253, 8
      %s257 = sadd.s32 %s255, %s256
      %s258 = smul.addr %s257, 8
      %s259 = scalar_lea.vmem %s6, %s258
      %p260 = scmp.lt.s32.totalorder %s21, 1
      %s261 = scalar_select %p260, %s21, 1
      %s262 = smul.addr %s261, 8
      %s263 = smul.addr %s262, 8
      %s264 = scalar_lea.vmem %s0, %s263
      %s265 = smul.u32 8, %s22
      %p266 = scmp.lt.s32.totalorder %s21, 1
      %s267 = scalar_select %p266, %s21, 1
      %p268 = scmp.lt.s32.totalorder %s265, 7
      %s269 = scalar_select %p268, %s265, 7
      %s270 = smul.addr %s267, 8
      %s271 = sadd.s32 %s269, %s270
      %s272 = smul.addr %s271, 8
      %s273 = scalar_lea.vmem %s6, %s272
      %s274 = smul.u32 8, %s22
      %p276 = scmp.eq.s32.totalorder %s22, 0
      // Predicated region
      $region45: #{tpu_custom_call.1} parent=43 // pred_check
        %p277 = pneg %p276
      $region46: #{tpu_custom_call.1} parent=43 // pred_check_branch
        %279 = sbr.rel (%p277) target = $region48
      $region47: #{tpu_custom_call.1} parent=43 // pred_region
        %v280 = vld [vmem:[%s264] sm:$0xff]
        %v281 = vld [vmem:[%s264 + $0x8] sm:$0xff]
        %v282 = vld [vmem:[%s264 + $0x10] sm:$0xff]
        %v283 = vld [vmem:[%s264 + $0x18] sm:$0xff]
        %v284 = vld [vmem:[%s264 + $0x20] sm:$0xff]
        %v285 = vld [vmem:[%s264 + $0x28] sm:$0xff]
        %v286 = vld [vmem:[%s264 + $0x30] sm:$0xff]
        %v287 = vld [vmem:[%s264 + $0x38] sm:$0xff]
        %v288 = vpack.c.bf16 %v281, %v280
        %v289 = vpack.c.bf16 %v283, %v282
        %v290 = vpack.c.bf16 %v285, %v284
        %v291 = vpack.c.bf16 %v287, %v286
        %v292 = vld [vmem:[%s2] sm:$0xf]
        %v293 = vld [vmem:[%s2 + $0x4] sm:$0xf]
        %v294 = vld [vmem:[%s2 + $0x8] sm:$0xf]
        %v295 = vld [vmem:[%s2 + $0xc] sm:$0xf]
        %v300 = vunpack.c.l.b16 %v292
        %v301 = vunpack.c.l.b16 %v293
        %v302 = vunpack.c.l.b16 %v294
        %v303 = vunpack.c.l.b16 %v295
        %v304 = vpack.c.b16 %v301, %v300
        %v305 = vpack.c.b16 %v303, %v302
        %vm308 = vcmask 261120
        %v310 = vsel %vm308, %v288, 0
        %v313 = vsel %vm308, %v289, 0
        %v316 = vsel %vm308, %v290, 0
        %v319 = vsel %vm308, %v291, 0
        %321 = vmatprep.subr.bf16.mxu0 0
        %322 = vmatpush1.bf16.msra.mxu0 %v304
        %323 = vmatprep.subr.bf16.mxu0 0
        %324 = vmatpush1.bf16.msra.mxu0 %v305
        %325 = vmatprep.subr.bf16.mxu0 0
        %326 = vmatpush1.bf16.msra.mxu0 0
        %327 = vmatprep.subr.bf16.mxu0 0
        %328 = vmatpush1.bf16.msra.mxu0 0
        %329 = vmatprep.subr.bf16.mxu0 0
        %330 = vmatpush1.bf16.msra.mxu0 0
        %331 = vmatprep.subr.bf16.mxu0 0
        %332 = vmatpush1.bf16.msra.mxu0 0
        %333 = vmatprep.subr.bf16.mxu0 0
        %334 = vmatpush1.bf16.msra.mxu0 0
        %335 = vmatprep.subr.bf16.mxu0 0
        %336 = vmatpush1.bf16.msra.mxu0 0
        %337 = vmatprep.subr.bf16.mxu0 0
        %338 = vmatpush1.bf16.msra.mxu0 0
        %339 = vmatprep.subr.bf16.mxu0 0
        %340 = vmatpush1.bf16.msra.mxu0 0
        %341 = vmatprep.subr.bf16.mxu0 0
        %342 = vmatpush1.bf16.msra.mxu0 0
        %343 = vmatprep.subr.bf16.mxu0 0
        %344 = vmatpush1.bf16.msra.mxu0 0
        %345 = vmatprep.subr.bf16.mxu0 0
        %346 = vmatpush1.bf16.msra.mxu0 0
        %347 = vmatprep.subr.bf16.mxu0 0
        %348 = vmatpush1.bf16.msra.mxu0 0
        %349 = vmatprep.subr.bf16.mxu0 0
        %350 = vmatpush1.bf16.msra.mxu0 0
        %351 = vmatprep.subr.bf16.mxu0 0
        %352 = vmatpush1.bf16.msra.mxu0 0
        %353 = vmatprep.mubr.bf16.mxu0 0
        %354 = vmatmul.mubr.bf16.gmra.mrb[0].mxu0 %v310
        %v355 = vpop.f32.mrb[0].mxu0
        %v356 = vadd.f32 0.0, %v355
        %v357 = vpop.f32.mrb[0].mxu0
        %v358 = vpop.f32.mrb[0].mxu0
        %v359 = vadd.f32 0.0, %v358
        %v360 = vpop.f32.mrb[0].mxu0
        %361 = vmatprep.mubr.bf16.mxu0 0
        %362 = vmatmul.mubr.bf16.gmra.mrb[0].mxu0 %v313
        %v363 = vpop.f32.mrb[0].mxu0
        %v364 = vadd.f32 0.0, %v363
        %v365 = vpop.f32.mrb[0].mxu0
        %v366 = vpop.f32.mrb[0].mxu0
        %v367 = vadd.f32 0.0, %v366
        %v368 = vpop.f32.mrb[0].mxu0
        %369 = vmatprep.mubr.bf16.mxu0 0
        %370 = vmatmul.mubr.bf16.gmra.mrb[0].mxu0 %v316
        %v371 = vpop.f32.mrb[0].mxu0
        %v372 = vadd.f32 0.0, %v371
        %v373 = vpop.f32.mrb[0].mxu0
        %v374 = vpop.f32.mrb[0].mxu0
        %v375 = vadd.f32 0.0, %v374
        %v376 = vpop.f32.mrb[0].mxu0
        %377 = vmatprep.mubr.bf16.mxu0 0
        %378 = vmatmul.mubr.bf16.gmra.mrb[0].mxu0 %v319
        %v379 = vpop.f32.mrb[0].mxu0
        %v380 = vadd.f32 0.0, %v379
        %v381 = vpop.f32.mrb[0].mxu0
        %v382 = vpop.f32.mrb[0].mxu0
        %v383 = vadd.f32 0.0, %v382
        %v384 = vpop.f32.mrb[0].mxu0
        %385 = vdwg.mxu0
        %v386 = vpack.c.bf16 %v359, %v356
        %v387 = vpack.c.bf16 %v367, %v364
        %v388 = vpack.c.bf16 %v375, %v372
        %v389 = vpack.c.bf16 %v383, %v380
        %390 = vst.msk [vmem:[#allocation2] sm:$0xff] %vm308, %v386
        %391 = vst.msk [vmem:[#allocation2 + $0x8] sm:$0xff] %vm308, %v387
        %392 = vst.msk [vmem:[#allocation2 + $0x10] sm:$0xff] %vm308, %v388
        %393 = vst.msk [vmem:[#allocation2 + $0x18] sm:$0xff] %vm308, %v389
        %v394 = vld [vmem:[%s3] sm:$0xf]
        %v395 = vld [vmem:[%s3 + $0x4] sm:$0xf]
        %v396 = vld [vmem:[%s3 + $0x8] sm:$0xf]
        %v397 = vld [vmem:[%s3 + $0xc] sm:$0xf]
        %v398 = vld [vmem:[%s5] sm:$0x1]
        %v400 = vlaneseq
        %v401 = vshrl.u32 %v400, 7
        %v402 = vsub.s32 0, %v401
        %v403 = vrot.slane %v398, %v402
        %v409 = vunpack.c.l.b16 %v394
        %v410 = vunpack.c.l.b16 %v395
        %v411 = vunpack.c.l.b16 %v396
        %v412 = vunpack.c.l.b16 %v397
        %v413 = vpack.c.b16 %v410, %v409
        %v414 = vpack.c.b16 %v412, %v411
        %417 = vmatprep.subr.bf16.mxu0 0
        %418 = vmatpush1.bf16.msra.mxu0 %v413
        %419 = vmatprep.subr.bf16.mxu0 0
        %420 = vmatpush1.bf16.msra.mxu0 %v414
        %421 = vmatprep.subr.bf16.mxu0 0
        %422 = vmatpush1.bf16.msra.mxu0 0
        %423 = vmatprep.subr.bf16.mxu0 0
        %424 = vmatpush1.bf16.msra.mxu0 0
        %425 = vmatprep.subr.bf16.mxu0 0
        %426 = vmatpush1.bf16.msra.mxu0 0
        %427 = vmatprep.subr.bf16.mxu0 0
        %428 = vmatpush1.bf16.msra.mxu0 0
        %429 = vmatprep.subr.bf16.mxu0 0
        %430 = vmatpush1.bf16.msra.mxu0 0
        %431 = vmatprep.subr.bf16.mxu0 0
        %432 = vmatpush1.bf16.msra.mxu0 0
        %433 = vmatprep.subr.bf16.mxu0 0
        %434 = vmatpush1.bf16.msra.mxu0 0
        %435 = vmatprep.subr.bf16.mxu0 0
        %436 = vmatpush1.bf16.msra.mxu0 0
        %437 = vmatprep.subr.bf16.mxu0 0
        %438 = vmatpush1.bf16.msra.mxu0 0
        %439 = vmatprep.subr.bf16.mxu0 0
        %440 = vmatpush1.bf16.msra.mxu0 0
        %441 = vmatprep.subr.bf16.mxu0 0
        %442 = vmatpush1.bf16.msra.mxu0 0
        %443 = vmatprep.subr.bf16.mxu0 0
        %444 = vmatpush1.bf16.msra.mxu0 0
        %445 = vmatprep.subr.bf16.mxu0 0
        %446 = vmatpush1.bf16.msra.mxu0 0
        %447 = vmatprep.subr.bf16.mxu0 0
        %448 = vmatpush1.bf16.msra.mxu0 0
        %449 = vmatprep.mubr.bf16.mxu0 0
        %450 = vmatmul.mubr.bf16.gmra.mrb[0].mxu0 %v310
        %v451 = vpop.f32.mrb[0].mxu0
        %v452 = vadd.f32 %v403, %v451
        %v453 = vpop.f32.mrb[0].mxu0
        %v454 = vpop.f32.mrb[0].mxu0
        %v455 = vadd.f32 %v403, %v454
        %v456 = vpop.f32.mrb[0].mxu0
        %457 = vmatprep.mubr.bf16.mxu0 0
        %458 = vmatmul.mubr.bf16.gmra.mrb[0].mxu0 %v313
        %v459 = vpop.f32.mrb[0].mxu0
        %v460 = vadd.f32 %v403, %v459
        %v461 = vpop.f32.mrb[0].mxu0
        %v462 = vpop.f32.mrb[0].mxu0
        %v463 = vadd.f32 %v403, %v462
        %v464 = vpop.f32.mrb[0].mxu0
        %465 = vmatprep.mubr.bf16.mxu0 0
        %466 = vmatmul.mubr.bf16.gmra.mrb[0].mxu0 %v316
        %v467 = vpop.f32.mrb[0].mxu0
        %v468 = vadd.f32 %v403, %v467
        %v469 = vpop.f32.mrb[0].mxu0
        %v470 = vpop.f32.mrb[0].mxu0
        %v471 = vadd.f32 %v403, %v470
        %v472 = vpop.f32.mrb[0].mxu0
        %473 = vmatprep.mubr.bf16.mxu0 0
        %474 = vmatmul.mubr.bf16.gmra.mrb[0].mxu0 %v319
        %v475 = vpop.f32.mrb[0].mxu0
        %v476 = vadd.f32 %v403, %v475
        %v477 = vpop.f32.mrb[0].mxu0
        %v478 = vpop.f32.mrb[0].mxu0
        %v479 = vadd.f32 %v403, %v478
        %v480 = vpop.f32.mrb[0].mxu0
        %481 = vdwg.mxu0
        %v482 = vpack.c.bf16 %v455, %v452
        %v483 = vpack.c.bf16 %v463, %v460
        %v484 = vpack.c.bf16 %v471, %v468
        %v485 = vpack.c.bf16 %v479, %v476
        %486 = vst.msk [vmem:[#allocation3] sm:$0xff] %vm308, %v482
        %487 = vst.msk [vmem:[#allocation3 + $0x8] sm:$0xff] %vm308, %v483
        %488 = vst.msk [vmem:[#allocation3 + $0x10] sm:$0xff] %vm308, %v484
        %489 = vst.msk [vmem:[#allocation3 + $0x18] sm:$0xff] %vm308, %v485
      $region48: #{tpu_custom_call.1} parent=43 // pred_fallthru
        _
      %s490 = smul.u32 %s22, 64
      %s491 = scalar_lea.vmem %s264, %s490
      %v492 = vld [vmem:[%s491] sm:$0xff]
      %v493 = vld [vmem:[%s491 + $0x8] sm:$0xff]
      %v494 = vld [vmem:[%s491 + $0x10] sm:$0xff]
      %v495 = vld [vmem:[%s491 + $0x18] sm:$0xff]
      %v496 = vld [vmem:[%s491 + $0x20] sm:$0xff]
      %v497 = vld [vmem:[%s491 + $0x28] sm:$0xff]
      %v498 = vld [vmem:[%s491 + $0x30] sm:$0xff]
      %v499 = vld [vmem:[%s491 + $0x38] sm:$0xff]
      %v500 = vpack.c.bf16 %v493, %v492
      %v501 = vpack.c.bf16 %v495, %v494
      %v502 = vpack.c.bf16 %v497, %v496
      %v503 = vpack.c.bf16 %v499, %v498
      %v504 = vld [vmem:[%s1] sm:$0xf]
      %v505 = vld [vmem:[%s1 + $0x4] sm:$0xf]
      %v506 = vld [vmem:[%s1 + $0x8] sm:$0xf]
      %v507 = vld [vmem:[%s1 + $0xc] sm:$0xf]
      %v508 = vld [vmem:[%s4] sm:$0x1]
      %v510 = vlaneseq
      %v511 = vshrl.u32 %v510, 7
      %v512 = vsub.s32 0, %v511
      %v513 = vrot.slane %v508, %v512
      %v519 = vunpack.c.l.b16 %v504
      %v520 = vunpack.c.l.b16 %v505
      %v521 = vunpack.c.l.b16 %v506
      %v522 = vunpack.c.l.b16 %v507
      %v523 = vpack.c.b16 %v520, %v519
      %v524 = vpack.c.b16 %v522, %v521
      %vm527 = vcmask 261120
      %v529 = vsel %vm527, %v500, 0
      %v532 = vsel %vm527, %v501, 0
      %v535 = vsel %vm527, %v502, 0
      %v538 = vsel %vm527, %v503, 0
      %540 = vmatprep.subr.bf16.mxu0 0
      %541 = vmatpush1.bf16.msra.mxu0 %v523
      %542 = vmatprep.subr.bf16.mxu0 0
      %543 = vmatpush1.bf16.msra.mxu0 %v524
      %544 = vmatprep.subr.bf16.mxu0 0
      %545 = vmatpush1.bf16.msra.mxu0 0
      %546 = vmatprep.subr.bf16.mxu0 0
      %547 = vmatpush1.bf16.msra.mxu0 0
      %548 = vmatprep.subr.bf16.mxu0 0
      %549 = vmatpush1.bf16.msra.mxu0 0
      %550 = vmatprep.subr.bf16.mxu0 0
      %551 = vmatpush1.bf16.msra.mxu0 0
      %552 = vmatprep.subr.bf16.mxu0 0
      %553 = vmatpush1.bf16.msra.mxu0 0
      %554 = vmatprep.subr.bf16.mxu0 0
      %555 = vmatpush1.bf16.msra.mxu0 0
      %556 = vmatprep.subr.bf16.mxu0 0
      %557 = vmatpush1.bf16.msra.mxu0 0
      %558 = vmatprep.subr.bf16.mxu0 0
      %559 = vmatpush1.bf16.msra.mxu0 0
      %560 = vmatprep.subr.bf16.mxu0 0
      %561 = vmatpush1.bf16.msra.mxu0 0
      %562 = vmatprep.subr.bf16.mxu0 0
      %563 = vmatpush1.bf16.msra.mxu0 0
      %564 = vmatprep.subr.bf16.mxu0 0
      %565 = vmatpush1.bf16.msra.mxu0 0
      %566 = vmatprep.subr.bf16.mxu0 0
      %567 = vmatpush1.bf16.msra.mxu0 0
      %568 = vmatprep.subr.bf16.mxu0 0
      %569 = vmatpush1.bf16.msra.mxu0 0
      %570 = vmatprep.subr.bf16.mxu0 0
      %571 = vmatpush1.bf16.msra.mxu0 0
      %572 = vmatprep.mubr.bf16.mxu0 0
      %573 = vmatmul.mubr.bf16.gmra.mrb[0].mxu0 %v529
      %v574 = vpop.f32.mrb[0].mxu0
      %v575 = vadd.f32 %v513, %v574
      %v576 = vpop.f32.mrb[0].mxu0
      %v577 = vpop.f32.mrb[0].mxu0
      %v578 = vadd.f32 %v513, %v577
      %v579 = vpop.f32.mrb[0].mxu0
      %580 = vmatprep.mubr.bf16.mxu0 0
      %581 = vmatmul.mubr.bf16.gmra.mrb[0].mxu0 %v532
      %v582 = vpop.f32.mrb[0].mxu0
      %v583 = vadd.f32 %v513, %v582
      %v584 = vpop.f32.mrb[0].mxu0
      %v585 = vpop.f32.mrb[0].mxu0
      %v586 = vadd.f32 %v513, %v585
      %v587 = vpop.f32.mrb[0].mxu0
      %588 = vmatprep.mubr.bf16.mxu0 0
      %589 = vmatmul.mubr.bf16.gmra.mrb[0].mxu0 %v535
      %v590 = vpop.f32.mrb[0].mxu0
      %v591 = vadd.f32 %v513, %v590
      %v592 = vpop.f32.mrb[0].mxu0
      %v593 = vpop.f32.mrb[0].mxu0
      %v594 = vadd.f32 %v513, %v593
      %v595 = vpop.f32.mrb[0].mxu0
      %596 = vmatprep.mubr.bf16.mxu0 0
      %597 = vmatmul.mubr.bf16.gmra.mrb[0].mxu0 %v538
      %v598 = vpop.f32.mrb[0].mxu0
      %v599 = vadd.f32 %v513, %v598
      %v600 = vpop.f32.mrb[0].mxu0
      %v601 = vpop.f32.mrb[0].mxu0
      %v602 = vadd.f32 %v513, %v601
      %v603 = vpop.f32.mrb[0].mxu0
      %604 = vdwg.mxu0
      %v605 = vpack.c.bf16 %v578, %v575
      %v606 = vpack.c.bf16 %v586, %v583
      %v607 = vpack.c.bf16 %v594, %v591
      %v608 = vpack.c.bf16 %v602, %v599
      %v609 = vld [vmem:[#allocation2] sm:$0xff]
      %v610 = vld [vmem:[#allocation2 + $0x8] sm:$0xff]
      %v611 = vld [vmem:[#allocation2 + $0x10] sm:$0xff]
      %v612 = vld [vmem:[#allocation2 + $0x18] sm:$0xff]
      %v614 = vsel %vm527, %v605, 0
      %v617 = vsel %vm527, %v606, 0
      %v620 = vsel %vm527, %v607, 0
      %v623 = vsel %vm527, %v608, 0
      %v626 = vsel %vm527, %v609, 0
      %v629 = vsel %vm527, %v610, 0
      %v632 = vsel %vm527, %v611, 0
      %v635 = vsel %vm527, %v612, 0
      %637 = vmatprep.subr.bf16.mxu0 0
      %638 = vmatpush1.bf16.xpose.msra.mxu0 %v626
      %639 = vmatprep.subr.bf16.mxu0 0
      %640 = vmatpush1.bf16.xpose.msra.mxu0 %v629
      %641 = vmatprep.subr.bf16.mxu0 0
      %642 = vmatpush1.bf16.xpose.msra.mxu0 %v632
      %643 = vmatprep.subr.bf16.mxu0 0
      %644 = vmatpush1.bf16.xpose.msra.mxu0 %v635
      %645 = vmatprep.subr.bf16.mxu0 0
      %646 = vmatpush1.bf16.xpose.msra.mxu0 0
      %647 = vmatprep.subr.bf16.mxu0 0
      %648 = vmatpush1.bf16.xpose.msra.mxu0 0
      %649 = vmatprep.subr.bf16.mxu0 0
      %650 = vmatpush1.bf16.xpose.msra.mxu0 0
      %651 = vmatprep.subr.bf16.mxu0 0
      %652 = vmatpush1.bf16.xpose.msra.mxu0 0
      %653 = vmatprep.subr.bf16.mxu0 0
      %654 = vmatpush1.bf16.xpose.msra.mxu0 0
      %655 = vmatprep.subr.bf16.mxu0 0
      %656 = vmatpush1.bf16.xpose.msra.mxu0 0
      %657 = vmatprep.subr.bf16.mxu0 0
      %658 = vmatpush1.bf16.xpose.msra.mxu0 0
      %659 = vmatprep.subr.bf16.mxu0 0
      %660 = vmatpush1.bf16.xpose.msra.mxu0 0
      %661 = vmatprep.subr.bf16.mxu0 0
      %662 = vmatpush1.bf16.xpose.msra.mxu0 0
      %663 = vmatprep.subr.bf16.mxu0 0
      %664 = vmatpush1.bf16.xpose.msra.mxu0 0
      %665 = vmatprep.subr.bf16.mxu0 0
      %666 = vmatpush1.bf16.xpose.msra.mxu0 0
      %667 = vmatprep.subr.bf16.mxu0 0
      %668 = vmatpush1.bf16.xpose.msra.mxu0 0
      %669 = vmatprep.mubr.bf16.mxu0 0
      %670 = vmatmul.mubr.bf16.gmra.mrb[0].mxu0 %v614
      %v671 = vpop.f32.mrb[0].mxu0
      %v672 = vadd.f32 0.0, %v671
      %v673 = vpop.f32.mrb[0].mxu0
      %v674 = vpop.f32.mrb[0].mxu0
      %v675 = vadd.f32 0.0, %v674
      %v676 = vpop.f32.mrb[0].mxu0
      %677 = vmatprep.mubr.bf16.mxu0 0
      %678 = vmatmul.mubr.bf16.gmra.mrb[0].mxu0 %v617
      %v679 = vpop.f32.mrb[0].mxu0
      %v680 = vadd.f32 0.0, %v679
      %v681 = vpop.f32.mrb[0].mxu0
      %v682 = vpop.f32.mrb[0].mxu0
      %v683 = vadd.f32 0.0, %v682
      %v684 = vpop.f32.mrb[0].mxu0
      %685 = vmatprep.mubr.bf16.mxu0 0
      %686 = vmatmul.mubr.bf16.gmra.mrb[0].mxu0 %v620
      %v687 = vpop.f32.mrb[0].mxu0
      %v688 = vadd.f32 0.0, %v687
      %v689 = vpop.f32.mrb[0].mxu0
      %v690 = vpop.f32.mrb[0].mxu0
      %v691 = vadd.f32 0.0, %v690
      %v692 = vpop.f32.mrb[0].mxu0
      %693 = vmatprep.mubr.bf16.mxu0 0
      %694 = vmatmul.mubr.bf16.gmra.mrb[0].mxu0 %v623
      %v695 = vpop.f32.mrb[0].mxu0
      %v696 = vadd.f32 0.0, %v695
      %v697 = vpop.f32.mrb[0].mxu0
      %v698 = vpop.f32.mrb[0].mxu0
      %v699 = vadd.f32 0.0, %v698
      %v700 = vpop.f32.mrb[0].mxu0
      %701 = vdwg.mxu0
      %vm702 = vcmask 523264
      %v703 = vsel %vm702, %v672, -inf
      %704 = vmax.xlane.f32.xlu0 %v703
      %v705 = vpop.xlane.xlu0 %704
      %v706 = vsel %vm702, %v675, -inf
      %707 = vmax.xlane.f32.xlu0 %v706
      %v708 = vpop.xlane.xlu0 %707
      %v709 = vsel %vm702, %v680, -inf
      %710 = vmax.xlane.f32.xlu0 %v709
      %v711 = vpop.xlane.xlu0 %710
      %v712 = vsel %vm702, %v683, -inf
      %713 = vmax.xlane.f32.xlu0 %v712
      %v714 = vpop.xlane.xlu0 %713
      %v715 = vsel %vm702, %v688, -inf
      %716 = vmax.xlane.f32.xlu0 %v715
      %v717 = vpop.xlane.xlu0 %716
      %v718 = vsel %vm702, %v691, -inf
      %719 = vmax.xlane.f32.xlu0 %v718
      %v720 = vpop.xlane.xlu0 %719
      %v721 = vsel %vm702, %v696, -inf
      %722 = vmax.xlane.f32.xlu0 %v721
      %v723 = vpop.xlane.xlu0 %722
      %v724 = vsel %vm702, %v699, -inf
      %725 = vmax.xlane.f32.xlu0 %v724
      %v726 = vpop.xlane.xlu0 %725
      %v727 = vsub.f32 %v672, %v705
      %v728 = vsub.f32 %v675, %v708
      %v729 = vsub.f32 %v680, %v711
      %v730 = vsub.f32 %v683, %v714
      %v731 = vsub.f32 %v688, %v717
      %v732 = vsub.f32 %v691, %v720
      %v733 = vsub.f32 %v696, %v723
      %v734 = vsub.f32 %v699, %v726
      %v735 = vmul.f32 %v727, 1.442695
      %v736 = vpow.pop %v735
      %v737 = vmul.f32 %v728, 1.442695
      %v738 = vpow.pop %v737
      %v739 = vmul.f32 %v729, 1.442695
      %v740 = vpow.pop %v739
      %v741 = vmul.f32 %v730, 1.442695
      %v742 = vpow.pop %v741
      %v743 = vmul.f32 %v731, 1.442695
      %v744 = vpow.pop %v743
      %v745 = vmul.f32 %v732, 1.442695
      %v746 = vpow.pop %v745
      %v747 = vmul.f32 %v733, 1.442695
      %v748 = vpow.pop %v747
      %v749 = vmul.f32 %v734, 1.442695
      %v750 = vpow.pop %v749
      %v751 = vsel %vm702, %v736, 0.0
      %752 = vadd.xlane.f32.xlu0 %v751
      %v753 = vpop.xlane.xlu0 %752
      %v754 = vsel %vm702, %v738, 0.0
      %755 = vadd.xlane.f32.xlu0 %v754
      %v756 = vpop.xlane.xlu0 %755
      %v757 = vsel %vm702, %v740, 0.0
      %758 = vadd.xlane.f32.xlu0 %v757
      %v759 = vpop.xlane.xlu0 %758
      %v760 = vsel %vm702, %v742, 0.0
      %761 = vadd.xlane.f32.xlu0 %v760
      %v762 = vpop.xlane.xlu0 %761
      %v763 = vsel %vm702, %v744, 0.0
      %764 = vadd.xlane.f32.xlu0 %v763
      %v765 = vpop.xlane.xlu0 %764
      %v766 = vsel %vm702, %v746, 0.0
      %767 = vadd.xlane.f32.xlu0 %v766
      %v768 = vpop.xlane.xlu0 %767
      %v769 = vsel %vm702, %v748, 0.0
      %770 = vadd.xlane.f32.xlu0 %v769
      %v771 = vpop.xlane.xlu0 %770
      %v772 = vsel %vm702, %v750, 0.0
      %773 = vadd.xlane.f32.xlu0 %v772
      %v774 = vpop.xlane.xlu0 %773
      %v775 = vpack.c.bf16 %v738, %v736
      %v776 = vpack.c.bf16 %v742, %v740
      %v777 = vpack.c.bf16 %v746, %v744
      %v778 = vpack.c.bf16 %v750, %v748
      %v779 = vld [vmem:[#allocation3] sm:$0xff]
      %v780 = vld [vmem:[#allocation3 + $0x8] sm:$0xff]
      %v781 = vld [vmem:[#allocation3 + $0x10] sm:$0xff]
      %v782 = vld [vmem:[#allocation3 + $0x18] sm:$0xff]
      %v784 = vsel %vm702, %v775, 0
      %v787 = vsel %vm702, %v776, 0
      %v790 = vsel %vm702, %v777, 0
      %v793 = vsel %vm702, %v778, 0
      %795 = vmatprep.subr.bf16.mxu0 0
      %796 = vmatpush1.bf16.msra.mxu0 %v779
      %797 = vmatprep.subr.bf16.mxu0 0
      %798 = vmatpush1.bf16.msra.mxu0 %v780
      %799 = vmatprep.subr.bf16.mxu0 0
      %800 = vmatpush1.bf16.msra.mxu0 %v781
      %801 = vmatprep.subr.bf16.mxu0 0
      %802 = vmatpush1.bf16.msra.mxu0 %v782
      %803 = vmatprep.subr.bf16.mxu0 0
      %804 = vmatpush1.bf16.msra.mxu0 0
      %805 = vmatprep.subr.bf16.mxu0 0
      %806 = vmatpush1.bf16.msra.mxu0 0
      %807 = vmatprep.subr.bf16.mxu0 0
      %808 = vmatpush1.bf16.msra.mxu0 0
      %809 = vmatprep.subr.bf16.mxu0 0
      %810 = vmatpush1.bf16.msra.mxu0 0
      %811 = vmatprep.subr.bf16.mxu0 0
      %812 = vmatpush1.bf16.msra.mxu0 0
      %813 = vmatprep.subr.bf16.mxu0 0
      %814 = vmatpush1.bf16.msra.mxu0 0
      %815 = vmatprep.subr.bf16.mxu0 0
      %816 = vmatpush1.bf16.msra.mxu0 0
      %817 = vmatprep.subr.bf16.mxu0 0
      %818 = vmatpush1.bf16.msra.mxu0 0
      %819 = vmatprep.subr.bf16.mxu0 0
      %820 = vmatpush1.bf16.msra.mxu0 0
      %821 = vmatprep.subr.bf16.mxu0 0
      %822 = vmatpush1.bf16.msra.mxu0 0
      %823 = vmatprep.subr.bf16.mxu0 0
      %824 = vmatpush1.bf16.msra.mxu0 0
      %825 = vmatprep.subr.bf16.mxu0 0
      %826 = vmatpush1.bf16.msra.mxu0 0
      %827 = vmatprep.mubr.bf16.mxu0 0
      %828 = vmatmul.mubr.bf16.gmra.mrb[0].mxu0 %v784
      %v829 = vpop.f32.mrb[0].mxu0
      %v830 = vadd.f32 0.0, %v829
      %v831 = vpop.f32.mrb[0].mxu0
      %v832 = vpop.f32.mrb[0].mxu0
      %v833 = vadd.f32 0.0, %v832
      %v834 = vpop.f32.mrb[0].mxu0
      %835 = vmatprep.mubr.bf16.mxu0 0
      %836 = vmatmul.mubr.bf16.gmra.mrb[0].mxu0 %v787
      %v837 = vpop.f32.mrb[0].mxu0
      %v838 = vadd.f32 0.0, %v837
      %v839 = vpop.f32.mrb[0].mxu0
      %v840 = vpop.f32.mrb[0].mxu0
      %v841 = vadd.f32 0.0, %v840
      %v842 = vpop.f32.mrb[0].mxu0
      %843 = vmatprep.mubr.bf16.mxu0 0
      %844 = vmatmul.mubr.bf16.gmra.mrb[0].mxu0 %v790
      %v845 = vpop.f32.mrb[0].mxu0
      %v846 = vadd.f32 0.0, %v845
      %v847 = vpop.f32.mrb[0].mxu0
      %v848 = vpop.f32.mrb[0].mxu0
      %v849 = vadd.f32 0.0, %v848
      %v850 = vpop.f32.mrb[0].mxu0
      %851 = vmatprep.mubr.bf16.mxu0 0
      %852 = vmatmul.mubr.bf16.gmra.mrb[0].mxu0 %v793
      %v853 = vpop.f32.mrb[0].mxu0
      %v854 = vadd.f32 0.0, %v853
      %v855 = vpop.f32.mrb[0].mxu0
      %v856 = vpop.f32.mrb[0].mxu0
      %v857 = vadd.f32 0.0, %v856
      %v858 = vpop.f32.mrb[0].mxu0
      %859 = vdwg.mxu0
      %v860 = vrcp.pop %v753
      %v861 = vrcp.pop %v756
      %v862 = vrcp.pop %v759
      %v863 = vrcp.pop %v762
      %v864 = vrcp.pop %v765
      %v865 = vrcp.pop %v768
      %v866 = vrcp.pop %v771
      %v867 = vrcp.pop %v774
      %v868 = vmul.f32 %v830, %v860
      %v869 = vmul.f32 %v833, %v861
      %v870 = vmul.f32 %v838, %v862
      %v871 = vmul.f32 %v841, %v863
      %v872 = vmul.f32 %v846, %v864
      %v873 = vmul.f32 %v849, %v865
      %v874 = vmul.f32 %v854, %v866
      %v875 = vmul.f32 %v857, %v867
      %876 = vst.msk [vmem:[%s273] sm:$0xff] %vm527, %v868
      %877 = vst.msk [vmem:[%s273 + $0x8] sm:$0xff] %vm527, %v869
      %878 = vst.msk [vmem:[%s273 + $0x10] sm:$0xff] %vm527, %v870
      %879 = vst.msk [vmem:[%s273 + $0x18] sm:$0xff] %vm527, %v871
      %880 = vst.msk [vmem:[%s273 + $0x20] sm:$0xff] %vm527, %v872
      %881 = vst.msk [vmem:[%s273 + $0x28] sm:$0xff] %vm527, %v873
      %882 = vst.msk [vmem:[%s273 + $0x30] sm:$0xff] %vm527, %v874
      %883 = vst.msk [vmem:[%s273 + $0x38] sm:$0xff] %vm527, %v875
      %s884 = smul.u32 8, %s22
      %p885 = scmp.lt.s32.totalorder %s21, 1
      %s886 = scalar_select %p885, %s21, 1
      %p887 = scmp.lt.s32.totalorder %s884, 7
      %s888 = scalar_select %p887, %s884, 7
      %s889 = smul.addr %s886, 8
      %s890 = sadd.s32 %s888, %s889
      %s891 = smul.addr %s890, 8
      %s892 = scalar_lea.vmem %s6, %s891
      // Predicated region
      $region49: #{tpu_custom_call.1} parent=43 // pred_check
        %p893 = pneg %p180
      $region50: #{tpu_custom_call.1} parent=43 // pred_check_branch
        %895 = sbr.rel (%p893) target = $region52
      $region51: #{tpu_custom_call.1} parent=43 // pred_region
        %s896 = smul.u32 8, %s22
      $region52: #{tpu_custom_call.1} parent=43 // pred_fallthru
        _
    $region44: #{tpu_custom_call.1} parent=5 // pred_fallthru
      _
    %p897 = scmp.le.s32.totalorder 2, %s12
    // Predicated region
    $region53: #{tpu_custom_call.1} parent=5 // pred_check
      %p898 = pneg %p897
    $region54: #{tpu_custom_call.1} parent=5 // pred_check_branch
      %900 = sbr.rel (%p898) target = $region56
    $region55: #{tpu_custom_call.1} parent=5 // pred_region
      %s901 = ssub.s32 %s12, 2
      // Predicated region
      $region57: #{tpu_custom_call.1} parent=55 // pred_check
        %p902 = pneg %p186
      $region58: #{tpu_custom_call.1} parent=55 // pred_check_branch
        %904 = sbr.rel (%p902) target = $region60
      $region59: #{tpu_custom_call.1} parent=55 // pred_region
        %s905 = smul.u32 8, %s24
        %p906 = scmp.lt.s32.totalorder %s23, 1
        %s907 = scalar_select %p906, %s23, 1
        %p908 = scmp.lt.s32.totalorder %s905, 7
        %s909 = scalar_select %p908, %s905, 7
        %s910 = smul.addr %s907, 8
        %s911 = sadd.s32 %s909, %s910
        %s912 = smul.addr %s911, 8
        %s913 = scalar_lea.vmem %s6, %s912
      $region60: #{tpu_custom_call.1} parent=55 // pred_fallthru
        _
    $region56: #{tpu_custom_call.1} parent=5 // pred_fallthru
      _
  $region6: #{tpu_custom_call.1} parent=0 // loop_footer
    %s16 = sadd.s32 1, %s12
  $region7: #{tpu_custom_call.1} parent=0 // loop_footer_branch
    %11 = sbr.rel target = $region3
  $region8: #{tpu_custom_call.1} parent=0 // loop_exit
    _

</llo_original>
